<compile_context>
chip_gen: v7x
topology: tpu7x:2x2x1
jax: 0.10.0
libtpu: 0.0.40
codegen_flags: <defaults>
</compile_context>

<pallas_src>
import functools

import jax
import jax.numpy as jnp
from jax.experimental import pallas as pl
from jax.experimental.pallas import tpu as pltpu

DIMS = [512, 256, 128, 64, 1]  # hidden / output widths of IC50Net


def _round_up(x, m):
    return ((x + m - 1) // m) * m


def ic50_kernel(x_ref,
                w1_ref, b1_ref,
                w2_ref, b2_ref,
                w3_ref, b3_ref,
                w4_ref, b4_ref,
                w5_ref, b5_ref,
                o_ref):
    """Fused 5-layer MLP forward on one (TILE_B, input_dim) batch tile.

    MXU operands are bf16, accumulation is f32 (preferred_element_type).
    Each hidden layer's epilogue (bias + ReLU + downcast) is fused so only the
    bf16 activation is kept in VMEM.  fc5 (64 -> 1) runs on the VPU
    (broadcast multiply + lane reduction) in f32.
    """

    def layer(h_bf16, w_ref, b_ref):
        acc = jnp.dot(h_bf16, w_ref[...], preferred_element_type=jnp.float32)
        # Bias-add / ReLU in f32 (v5e has no bf16 VALU), store only bf16.
        return jnp.maximum(acc + b_ref[...], 0.0).astype(jnp.bfloat16)

    # In-kernel cast of the f32 input tile (free under MXU slack).
    h = x_ref[...].astype(jnp.bfloat16)

    h = layer(h, w1_ref, b1_ref)   # fc1 + (dropout: identity at eval) + relu
    h = layer(h, w2_ref, b2_ref)   # fc2 + relu
    h = layer(h, w3_ref, b3_ref)   # fc3 + relu
    h = layer(h, w4_ref, b4_ref)   # fc4 + relu

    # fc5 (64 -> 1): VPU multiply + lane reduction, f32 throughout.
    out = jnp.sum(h.astype(jnp.float32) * w5_ref[...],
                  axis=-1, keepdims=True) + b5_ref[...]
    o_ref[...] = out.astype(o_ref.dtype)


@functools.partial(jax.jit, static_argnames=("tile_b_max",))
def ic50_forward(x, params, *, tile_b_max=2048):
    """x: (B, input_dim) f32.  params: list of (W, b) with W shaped (in, out)."""
    B, input_dim = x.shape

    # Batch tile: split B into cdiv(B, tile_b_max) tiles and round each tile
    # to a multiple of 16 (bf16 sublane packing).  The last tile may be
    # ragged — Pallas pads the block and drops out-of-bounds writes, so no
    # jnp.pad / extra HBM pass over x is needed and padding waste is bounded.
    num_tiles = pl.cdiv(B, tile_b_max)
    tile_b = _round_up(pl.cdiv(B, num_tiles), 16)
    num_tiles = pl.cdiv(B, tile_b)

    (w1, b1), (w2, b2), (w3, b3), (w4, b4), (w5, b5) = params

    # MXU weight operands in bf16; x stays f32 (cast happens inside the
    # kernel); biases and the tiny fc5 weights stay f32.
    flat_args = [
        x,
        w1.astype(jnp.bfloat16), b1.reshape(1, -1),
        w2.astype(jnp.bfloat16), b2.reshape(1, -1),
        w3.astype(jnp.bfloat16), b3.reshape(1, -1),
        w4.astype(jnp.bfloat16), b4.reshape(1, -1),
        w5.reshape(1, -1).astype(jnp.float32), b5.reshape(1, 1),
    ]

    def resident(shape):
        # Full-array block, constant index_map -> weight stays in VMEM for the
        # whole grid (no per-tile re-DMA).
        return pl.BlockSpec(shape, lambda i: (0,) * len(shape))

    in_specs = [pl.BlockSpec((tile_b, input_dim), lambda i: (i, 0))]
    for a in flat_args[1:]:
        in_specs.append(resident(a.shape))

    # TODO(synk): output last dim is 1 (masked single-lane stores); a
    # lane-dense (num_tiles, tile_b) relayout is possible but output bytes are
    # tiny, so it is left as-is.
    out_spec = pl.BlockSpec((tile_b, 1), lambda i: (i, 0))

    flops = 2 * B * (input_dim * 512 + 512 * 256 + 256 * 128
                     + 128 * 64 + 64 * 1)
    bytes_accessed = (x.size * x.dtype.itemsize               # f32 input stream
                      + sum(a.size * a.dtype.itemsize for a in flat_args[1:])
                      + B * 1 * 4)                            # f32 output stream
    cost = pl.CostEstimate(flops=flops, transcendentals=0,
                           bytes_accessed=bytes_accessed)

    out = pl.pallas_call(
        ic50_kernel,
        out_shape=jax.ShapeDtypeStruct((B, 1), jnp.float32),
        grid=(num_tiles,),
        in_specs=in_specs,
        out_specs=out_spec,
        compiler_params=pltpu.CompilerParams(
            # "parallel": megacore sharding where available; safe no-op on
            # single-TC chips and for num_tiles == 1.
            dimension_semantics=("parallel",),
            # Above v5e's 16 MiB / v6e's 32 MiB scoped defaults, below v7x's
            # 64 MiB physical VMEM.
            vmem_limit_bytes=48 * 1024 * 1024,
        ),
        cost_estimate=cost,
    )(*flat_args)

    return out


def init_params(key, input_dim):
    """Deterministic init matching nn.Linear shapes (stored transposed)."""
    dims = [input_dim] + DIMS
    params = []
    for i in range(len(dims) - 1):
        fan_in, fan_out = dims[i], dims[i + 1]
        key, kw, kb = jax.random.split(key, 3)
        bound = 1.0 / jnp.sqrt(jnp.float32(fan_in))
        w = jax.random.uniform(kw, (fan_in, fan_out), jnp.float32, -bound, bound)
        b = jax.random.uniform(kb, (fan_out,), jnp.float32, -bound, bound)
        params.append((w, b))
    return params


def reference_forward(x, params):
    """Pure-JAX reference with the same bf16-operand / f32-accumulate numerics."""
    *hidden, (w5, b5) = params
    h = x.astype(jnp.bfloat16)
    for w, b in hidden:
        acc = jnp.dot(h, w.astype(jnp.bfloat16),
                      preferred_element_type=jnp.float32)
        h = jnp.maximum(acc + b, 0.0).astype(jnp.bfloat16)
    return h.astype(jnp.float32) @ w5 + b5  # fc5 in f32, matching the kernel


if __name__ == "__main__":
    key = jax.random.PRNGKey(0)
    key, kx = jax.random.split(key)

    batch = 8
    input_dim = 32
    x = jax.random.normal(kx, (batch, input_dim), dtype=jnp.float32)

    params = init_params(key, input_dim)

    out = ic50_forward(x, params)
    out = jax.block_until_ready(out)

    ref = reference_forward(x, params)
    assert out.shape == (batch, 1), out.shape
    # bf16 matmul operands -> loosened tolerance vs. the (same-numerics) ref.
    assert jnp.allclose(out, ref, atol=1e-2, rtol=1e-2), (out, ref)

    print("KERNEL_OK")
</pallas_src>

<mosaic_0001>
module attributes {stable_mosaic.version = 11 : i64} {
  func.func @ic50_kernel(%arg0: i32, %arg1: memref<16x32xf32, #tpu.memory_space<vmem>>, %arg2: memref<32x512xbf16, #tpu.memory_space<vmem>>, %arg3: memref<1x512xf32, #tpu.memory_space<vmem>>, %arg4: memref<512x256xbf16, #tpu.memory_space<vmem>>, %arg5: memref<1x256xf32, #tpu.memory_space<vmem>>, %arg6: memref<256x128xbf16, #tpu.memory_space<vmem>>, %arg7: memref<1x128xf32, #tpu.memory_space<vmem>>, %arg8: memref<128x64xbf16, #tpu.memory_space<vmem>>, %arg9: memref<1x64xf32, #tpu.memory_space<vmem>>, %arg10: memref<1x64xf32, #tpu.memory_space<vmem>>, %arg11: memref<1x1xf32, #tpu.memory_space<vmem>>, %arg12: memref<16x1xf32, #tpu.memory_space<vmem>>) attributes {dimension_semantics = [#tpu.dimension_semantics<parallel>], iteration_bounds = array<i64: 1>, scalar_prefetch = 0 : i64, scratch_operands = 0 : i64, tpu.core_type = #tpu.core_type<tc>, window_params = [{transform_indices = @transform_0, window_bounds = array<i64: 16, 32>}, {pipeline_mode = #tpu.pipeline_mode<synchronous>, transform_indices = @transform_1, window_bounds = array<i64: 32, 512>}, {pipeline_mode = #tpu.pipeline_mode<synchronous>, transform_indices = @transform_2, window_bounds = array<i64: 1, 512>}, {pipeline_mode = #tpu.pipeline_mode<synchronous>, transform_indices = @transform_3, window_bounds = array<i64: 512, 256>}, {pipeline_mode = #tpu.pipeline_mode<synchronous>, transform_indices = @transform_4, window_bounds = array<i64: 1, 256>}, {pipeline_mode = #tpu.pipeline_mode<synchronous>, transform_indices = @transform_5, window_bounds = array<i64: 256, 128>}, {pipeline_mode = #tpu.pipeline_mode<synchronous>, transform_indices = @transform_6, window_bounds = array<i64: 1, 128>}, {pipeline_mode = #tpu.pipeline_mode<synchronous>, transform_indices = @transform_7, window_bounds = array<i64: 128, 64>}, {pipeline_mode = #tpu.pipeline_mode<synchronous>, transform_indices = @transform_8, window_bounds = array<i64: 1, 64>}, {pipeline_mode = #tpu.pipeline_mode<synchronous>, transform_indices = @transform_9, window_bounds = array<i64: 1, 64>}, {pipeline_mode = #tpu.pipeline_mode<synchronous>, transform_indices = @transform_10, window_bounds = array<i64: 1, 1>}, {transform_indices = @transform_11, window_bounds = array<i64: 16, 1>}]} {
    %c0 = arith.constant 0 : index
    %c0_0 = arith.constant 0 : index
    %0 = vector.load %arg1[%c0, %c0_0] : memref<16x32xf32, #tpu.memory_space<vmem>>, vector<16x32xf32>
    %1 = arith.truncf %0 : vector<16x32xf32> to vector<16x32xbf16>
    %c0_1 = arith.constant 0 : index
    %c0_2 = arith.constant 0 : index
    %2 = vector.load %arg2[%c0_1, %c0_2] : memref<32x512xbf16, #tpu.memory_space<vmem>>, vector<32x512xbf16>
    %cst = arith.constant dense<0.000000e+00> : vector<16x512xf32>
    %3 = tpu.matmul %1, %2, %cst {dimension_numbers = #tpu.dot_dimension_numbers<[1], [0], [0], [1], [0, 0, 1, 1], [], []>} : vector<16x32xbf16>, vector<32x512xbf16>, vector<16x512xf32> -> vector<16x512xf32>
    %c0_3 = arith.constant 0 : index
    %c0_4 = arith.constant 0 : index
    %4 = vector.load %arg3[%c0_3, %c0_4] : memref<1x512xf32, #tpu.memory_space<vmem>>, vector<1x512xf32>
    %5 = vector.broadcast %4 : vector<1x512xf32> to vector<16x512xf32>
    %6 = arith.addf %3, %5 : vector<16x512xf32>
    %cst_5 = arith.constant 0.000000e+00 : f32
    %7 = vector.broadcast %cst_5 : f32 to vector<16x512xf32>
    %8 = arith.maximumf %6, %7 : vector<16x512xf32>
    %9 = arith.truncf %8 : vector<16x512xf32> to vector<16x512xbf16>
    %c0_6 = arith.constant 0 : index
    %c0_7 = arith.constant 0 : index
    %10 = vector.load %arg4[%c0_6, %c0_7] : memref<512x256xbf16, #tpu.memory_space<vmem>>, vector<512x256xbf16>
    %cst_8 = arith.constant dense<0.000000e+00> : vector<16x256xf32>
    %11 = tpu.matmul %9, %10, %cst_8 {dimension_numbers = #tpu.dot_dimension_numbers<[1], [0], [0], [1], [0, 0, 1, 1], [], []>} : vector<16x512xbf16>, vector<512x256xbf16>, vector<16x256xf32> -> vector<16x256xf32>
    %c0_9 = arith.constant 0 : index
    %c0_10 = arith.constant 0 : index
    %12 = vector.load %arg5[%c0_9, %c0_10] : memref<1x256xf32, #tpu.memory_space<vmem>>, vector<1x256xf32>
    %13 = vector.broadcast %12 : vector<1x256xf32> to vector<16x256xf32>
    %14 = arith.addf %11, %13 : vector<16x256xf32>
    %cst_11 = arith.constant 0.000000e+00 : f32
    %15 = vector.broadcast %cst_11 : f32 to vector<16x256xf32>
    %16 = arith.maximumf %14, %15 : vector<16x256xf32>
    %17 = arith.truncf %16 : vector<16x256xf32> to vector<16x256xbf16>
    %c0_12 = arith.constant 0 : index
    %c0_13 = arith.constant 0 : index
    %18 = vector.load %arg6[%c0_12, %c0_13] : memref<256x128xbf16, #tpu.memory_space<vmem>>, vector<256x128xbf16>
    %cst_14 = arith.constant dense<0.000000e+00> : vector<16x128xf32>
    %19 = tpu.matmul %17, %18, %cst_14 {dimension_numbers = #tpu.dot_dimension_numbers<[1], [0], [0], [1], [0, 0, 1, 1], [], []>} : vector<16x256xbf16>, vector<256x128xbf16>, vector<16x128xf32> -> vector<16x128xf32>
    %c0_15 = arith.constant 0 : index
    %c0_16 = arith.constant 0 : index
    %20 = vector.load %arg7[%c0_15, %c0_16] : memref<1x128xf32, #tpu.memory_space<vmem>>, vector<1x128xf32>
    %21 = vector.broadcast %20 : vector<1x128xf32> to vector<16x128xf32>
    %22 = arith.addf %19, %21 : vector<16x128xf32>
    %cst_17 = arith.constant 0.000000e+00 : f32
    %23 = vector.broadcast %cst_17 : f32 to vector<16x128xf32>
    %24 = arith.maximumf %22, %23 : vector<16x128xf32>
    %25 = arith.truncf %24 : vector<16x128xf32> to vector<16x128xbf16>
    %c0_18 = arith.constant 0 : index
    %c0_19 = arith.constant 0 : index
    %26 = vector.load %arg8[%c0_18, %c0_19] : memref<128x64xbf16, #tpu.memory_space<vmem>>, vector<128x64xbf16>
    %cst_20 = arith.constant dense<0.000000e+00> : vector<16x64xf32>
    %27 = tpu.matmul %25, %26, %cst_20 {dimension_numbers = #tpu.dot_dimension_numbers<[1], [0], [0], [1], [0, 0, 1, 1], [], []>} : vector<16x128xbf16>, vector<128x64xbf16>, vector<16x64xf32> -> vector<16x64xf32>
    %c0_21 = arith.constant 0 : index
    %c0_22 = arith.constant 0 : index
    %28 = vector.load %arg9[%c0_21, %c0_22] : memref<1x64xf32, #tpu.memory_space<vmem>>, vector<1x64xf32>
    %29 = vector.broadcast %28 : vector<1x64xf32> to vector<16x64xf32>
    %30 = arith.addf %27, %29 : vector<16x64xf32>
    %cst_23 = arith.constant 0.000000e+00 : f32
    %31 = vector.broadcast %cst_23 : f32 to vector<16x64xf32>
    %32 = arith.maximumf %30, %31 : vector<16x64xf32>
    %33 = arith.truncf %32 : vector<16x64xf32> to vector<16x64xbf16>
    %34 = arith.extf %33 : vector<16x64xbf16> to vector<16x64xf32>
    %c0_24 = arith.constant 0 : index
    %c0_25 = arith.constant 0 : index
    %35 = vector.load %arg10[%c0_24, %c0_25] : memref<1x64xf32, #tpu.memory_space<vmem>>, vector<1x64xf32>
    %36 = vector.broadcast %35 : vector<1x64xf32> to vector<16x64xf32>
    %37 = arith.mulf %34, %36 : vector<16x64xf32>
    %cst_26 = arith.constant dense<0.000000e+00> : vector<16xf32>
    %38 = vector.multi_reduction <add>, %37, %cst_26 [1] : vector<16x64xf32> to vector<16xf32>
    %39 = vector.shape_cast %38 : vector<16xf32> to vector<16x1xf32>
    %c0_27 = arith.constant 0 : index
    %c0_28 = arith.constant 0 : index
    %40 = vector.load %arg11[%c0_27, %c0_28] : memref<1x1xf32, #tpu.memory_space<vmem>>, vector<1x1xf32>
    %41 = vector.broadcast %40 : vector<1x1xf32> to vector<16x1xf32>
    %42 = arith.addf %39, %41 : vector<16x1xf32>
    %c0_29 = arith.constant 0 : index
    %c0_30 = arith.constant 0 : index
    %43 = vector.load %arg12[%c0_29, %c0_30] : memref<16x1xf32, #tpu.memory_space<vmem>>, vector<16x1xf32>
    tpu.vector_store %arg12[%c0_29, %c0_30], %42 {strides = array<i32>} : memref<16x1xf32, #tpu.memory_space<vmem>>, vector<16x1xf32>,
    return
  }
  func.func @transform_0(%arg0: i32) -> (i32, i32) {
    %c0_i32 = arith.constant 0 : i32
    %c0_i32_0 = arith.constant 0 : i32
    return %arg0, %c0_i32 : i32, i32
  }
  func.func @transform_1(%arg0: i32) -> (i32, i32) {
    %c0_i32 = arith.constant 0 : i32
    %c0_i32_0 = arith.constant 0 : i32
    %c0_i32_1 = arith.constant 0 : i32
    return %c0_i32, %c0_i32_0 : i32, i32
  }
  func.func @transform_2(%arg0: i32) -> (i32, i32) {
    %c0_i32 = arith.constant 0 : i32
    %c0_i32_0 = arith.constant 0 : i32
    %c0_i32_1 = arith.constant 0 : i32
    return %c0_i32, %c0_i32_0 : i32, i32
  }
  func.func @transform_3(%arg0: i32) -> (i32, i32) {
    %c0_i32 = arith.constant 0 : i32
    %c0_i32_0 = arith.constant 0 : i32
    %c0_i32_1 = arith.constant 0 : i32
    return %c0_i32, %c0_i32_0 : i32, i32
  }
  func.func @transform_4(%arg0: i32) -> (i32, i32) {
    %c0_i32 = arith.constant 0 : i32
    %c0_i32_0 = arith.constant 0 : i32
    %c0_i32_1 = arith.constant 0 : i32
    return %c0_i32, %c0_i32_0 : i32, i32
  }
  func.func @transform_5(%arg0: i32) -> (i32, i32) {
    %c0_i32 = arith.constant 0 : i32
    %c0_i32_0 = arith.constant 0 : i32
    %c0_i32_1 = arith.constant 0 : i32
    return %c0_i32, %c0_i32_0 : i32, i32
  }
  func.func @transform_6(%arg0: i32) -> (i32, i32) {
    %c0_i32 = arith.constant 0 : i32
    %c0_i32_0 = arith.constant 0 : i32
    %c0_i32_1 = arith.constant 0 : i32
    return %c0_i32, %c0_i32_0 : i32, i32
  }
  func.func @transform_7(%arg0: i32) -> (i32, i32) {
    %c0_i32 = arith.constant 0 : i32
    %c0_i32_0 = arith.constant 0 : i32
    %c0_i32_1 = arith.constant 0 : i32
    return %c0_i32, %c0_i32_0 : i32, i32
  }
  func.func @transform_8(%arg0: i32) -> (i32, i32) {
    %c0_i32 = arith.constant 0 : i32
    %c0_i32_0 = arith.constant 0 : i32
    %c0_i32_1 = arith.constant 0 : i32
    return %c0_i32, %c0_i32_0 : i32, i32
  }
  func.func @transform_9(%arg0: i32) -> (i32, i32) {
    %c0_i32 = arith.constant 0 : i32
    %c0_i32_0 = arith.constant 0 : i32
    %c0_i32_1 = arith.constant 0 : i32
    return %c0_i32, %c0_i32_0 : i32, i32
  }
  func.func @transform_10(%arg0: i32) -> (i32, i32) {
    %c0_i32 = arith.constant 0 : i32
    %c0_i32_0 = arith.constant 0 : i32
    %c0_i32_1 = arith.constant 0 : i32
    return %c0_i32, %c0_i32_0 : i32, i32
  }
  func.func @transform_11(%arg0: i32) -> (i32, i32) {
    %c0_i32 = arith.constant 0 : i32
    %c0_i32_0 = arith.constant 0 : i32
    return %arg0, %c0_i32 : i32, i32
  }
}

</mosaic_0001>

<llo_original>
// kernel: ic50_forward.1
$region0: #{ic50_forward.1}
  #allocation0 [shape = 'u32[]', space=smem, size = 0x4, offset = 0x4, fixed_abs, tag = 'smem constant byte address 0x4 - core index']
  #allocation1 [shape = 'u32[144,128]{1,0:T(1,128)}', space=vmem, size = 0x12000, scoped, tag = 'internal scratch']
  #allocation2 [shape = 'f32[1,1]{1,0:T(1,128)S(1)}', space=vmem, size = 0x200, scoped, tag = 'scoped memory for ic50_forward.1']
  %s0 = inlined_call_operand.vmem [shape: f32[8,32], index: 0, kind: input, shape index: {}]
  %s1 = inlined_call_operand.vmem [shape: bf16[32,512], index: 1, kind: input, shape index: {}]
  %s2 = inlined_call_operand.vmem [shape: f32[1,512], index: 2, kind: input, shape index: {}]
  %s3 = inlined_call_operand.vmem [shape: bf16[512,256], index: 3, kind: input, shape index: {}]
  %s4 = inlined_call_operand.vmem [shape: f32[1,256], index: 4, kind: input, shape index: {}]
  %s5 = inlined_call_operand.vmem [shape: bf16[256,128], index: 5, kind: input, shape index: {}]
  %s6 = inlined_call_operand.vmem [shape: f32[1,128], index: 6, kind: input, shape index: {}]
  %s7 = inlined_call_operand.vmem [shape: bf16[128,64], index: 7, kind: input, shape index: {}]
  %s8 = inlined_call_operand.vmem [shape: f32[1,64], index: 8, kind: input, shape index: {}]
  %s9 = inlined_call_operand.vmem [shape: f32[1,64], index: 9, kind: input, shape index: {}]
  %s10 = inlined_call_operand.<no memory space> [shape: f32[1,1], index: 10, kind: input, shape index: {}]
  %s11 = inlined_call_operand.vmem [shape: f32[8,1], index: 11, kind: output, shape index: {}]
  %s12 = sld [smem:[#allocation0]]
  $region88: #{ic50_forward.1} parent=0
    _
  %s14 = ssub.s32 1, %s12
  %s15 = scalar_select 0, %s14, %s12
  %v16 = vstv %s10
  %17 = vst [vmem:[#allocation2] sm:$0x1] %v16
  $region1: #{ic50_forward.1} parent=0
    #allocation3 [shape = 'u8[8192]{0}', space=vmem, size = 0x2000, scoped, tag = 'output window, operand 0, single buffered']
    // Predicated region
    $region2: #{ic50_forward.1} parent=1 // pred_check
      _
    $region3: #{ic50_forward.1} parent=1 // pred_check_branch
      %19 = sbr.rel (0) target = $region5
    $region4: #{ic50_forward.1} parent=1 // pred_region
      _
    $region5: #{ic50_forward.1} parent=1 // pred_fallthru
      _
    // Predicated region
    $region6: #{ic50_forward.1} parent=1 // pred_check
      _
    $region7: #{ic50_forward.1} parent=1 // pred_check_branch
      %21 = sbr.rel (0) target = $region9
    $region8: #{ic50_forward.1} parent=1 // pred_region
      _
    $region9: #{ic50_forward.1} parent=1 // pred_fallthru
      _
    // Predicated region
    $region10: #{ic50_forward.1} parent=1 // pred_check
      _
    $region11: #{ic50_forward.1} parent=1 // pred_check_branch
      %23 = sbr.rel (0) target = $region13
    $region12: #{ic50_forward.1} parent=1 // pred_region
      _
    $region13: #{ic50_forward.1} parent=1 // pred_fallthru
      _
    // Predicated region
    $region14: #{ic50_forward.1} parent=1 // pred_check
      _
    $region15: #{ic50_forward.1} parent=1 // pred_check_branch
      %25 = sbr.rel (0) target = $region17
    $region16: #{ic50_forward.1} parent=1 // pred_region
      _
    $region17: #{ic50_forward.1} parent=1 // pred_fallthru
      _
    // Predicated region
    $region18: #{ic50_forward.1} parent=1 // pred_check
      _
    $region19: #{ic50_forward.1} parent=1 // pred_check_branch
      %27 = sbr.rel (0) target = $region21
    $region20: #{ic50_forward.1} parent=1 // pred_region
      _
    $region21: #{ic50_forward.1} parent=1 // pred_fallthru
      _
    // Predicated region
    $region22: #{ic50_forward.1} parent=1 // pred_check
      _
    $region23: #{ic50_forward.1} parent=1 // pred_check_branch
      %29 = sbr.rel (0) target = $region25
    $region24: #{ic50_forward.1} parent=1 // pred_region
      _
    $region25: #{ic50_forward.1} parent=1 // pred_fallthru
      _
    // Predicated region
    $region26: #{ic50_forward.1} parent=1 // pred_check
      _
    $region27: #{ic50_forward.1} parent=1 // pred_check_branch
      %31 = sbr.rel (0) target = $region29
    $region28: #{ic50_forward.1} parent=1 // pred_region
      _
    $region29: #{ic50_forward.1} parent=1 // pred_fallthru
      _
    // Predicated region
    $region30: #{ic50_forward.1} parent=1 // pred_check
      _
    $region31: #{ic50_forward.1} parent=1 // pred_check_branch
      %33 = sbr.rel (0) target = $region33
    $region32: #{ic50_forward.1} parent=1 // pred_region
      _
    $region33: #{ic50_forward.1} parent=1 // pred_fallthru
      _
    // Predicated region
    $region34: #{ic50_forward.1} parent=1 // pred_check
      _
    $region35: #{ic50_forward.1} parent=1 // pred_check_branch
      %35 = sbr.rel (0) target = $region37
    $region36: #{ic50_forward.1} parent=1 // pred_region
      _
    $region37: #{ic50_forward.1} parent=1 // pred_fallthru
      _
    // Predicated region
    $region38: #{ic50_forward.1} parent=1 // pred_check
      _
    $region39: #{ic50_forward.1} parent=1 // pred_check_branch
      %37 = sbr.rel (0) target = $region41
    $region40: #{ic50_forward.1} parent=1 // pred_region
      _
    $region41: #{ic50_forward.1} parent=1 // pred_fallthru
      _
    // Predicated region
    $region42: #{ic50_forward.1} parent=1 // pred_check
      _
    $region43: #{ic50_forward.1} parent=1 // pred_check_branch
      %39 = sbr.rel (0) target = $region45
    $region44: #{ic50_forward.1} parent=1 // pred_region
      _
    $region45: #{ic50_forward.1} parent=1 // pred_fallthru
      _
    %v41 = vld [vmem:[%s0] sm:$0xff]
    %v42 = vld [vmem:[%s0 + $0x8] sm:$0xff]
    %v43 = vpack.c.bf16 %v42, %v41
    %v44 = vld [vmem:[%s1] sm:$0xff]
    %v45 = vld [vmem:[%s1 + $0x8] sm:$0xff]
    %v46 = vld [vmem:[%s1 + $0x10] sm:$0xff]
    %v47 = vld [vmem:[%s1 + $0x18] sm:$0xff]
    %v48 = vld [vmem:[%s1 + $0x20] sm:$0xff]
    %v49 = vld [vmem:[%s1 + $0x28] sm:$0xff]
    %v50 = vld [vmem:[%s1 + $0x30] sm:$0xff]
    %v51 = vld [vmem:[%s1 + $0x38] sm:$0xff]
    %v52 = vld [vmem:[%s2] sm:$0xf]
    %v54 = vlaneseq
    %v55 = vshrl.u32 %v54, 7
    %v56 = vsub.s32 0, %v55
    %v57 = vrot.slane %v52, %v56
    %v58 = vlaneseq
    %v59 = vshrl.u32 %v58, 7
    %v60 = vsub.s32 1, %v59
    %v61 = vrot.slane %v52, %v60
    %v62 = vlaneseq
    %v63 = vshrl.u32 %v62, 7
    %v64 = vsub.s32 2, %v63
    %v65 = vrot.slane %v52, %v64
    %v66 = vlaneseq
    %v67 = vshrl.u32 %v66, 7
    %v68 = vsub.s32 3, %v67
    %v69 = vrot.slane %v52, %v68
    %v82 = vunpack.c.l.b16 %v44
    %v83 = vunpack.c.h.b16 %v44
    %v84 = vunpack.c.l.b16 %v45
    %v85 = vunpack.c.h.b16 %v45
    %v86 = vunpack.c.l.b16 %v46
    %v87 = vunpack.c.h.b16 %v46
    %v88 = vunpack.c.l.b16 %v47
    %v89 = vunpack.c.h.b16 %v47
    %v90 = vunpack.c.l.b16 %v48
    %v91 = vunpack.c.h.b16 %v48
    %v92 = vunpack.c.l.b16 %v49
    %v93 = vunpack.c.h.b16 %v49
    %v94 = vunpack.c.l.b16 %v50
    %v95 = vunpack.c.h.b16 %v50
    %v96 = vunpack.c.l.b16 %v51
    %v97 = vunpack.c.h.b16 %v51
    %v98 = vpack.c.b16 %v86, %v82
    %v99 = vpack.c.b16 %v87, %v83
    %v100 = vpack.c.b16 %v88, %v84
    %v101 = vpack.c.b16 %v89, %v85
    %v102 = vpack.c.b16 %v94, %v90
    %v103 = vpack.c.b16 %v95, %v91
    %v104 = vpack.c.b16 %v96, %v92
    %v105 = vpack.c.b16 %v97, %v93
    %vm114 = vcmask 261120
    %v116 = vsel %vm114, %v43, 0
    %118 = vmatprep.subr.bf16.mxu0 %v99
    %119 = vmatpush1.bf16.msra.mxu0 %v98
    %120 = vmatprep.subr.bf16.mxu0 %v103
    %121 = vmatpush1.bf16.msra.mxu0 %v102
    %122 = vmatprep.subr.bf16.mxu0 0
    %123 = vmatpush1.bf16.msra.mxu0 0
    %124 = vmatprep.subr.bf16.mxu0 0
    %125 = vmatpush1.bf16.msra.mxu0 0
    %126 = vmatprep.subr.bf16.mxu0 0
    %127 = vmatpush1.bf16.msra.mxu0 0
    %128 = vmatprep.subr.bf16.mxu0 0
    %129 = vmatpush1.bf16.msra.mxu0 0
    %130 = vmatprep.subr.bf16.mxu0 0
    %131 = vmatpush1.bf16.msra.mxu0 0
    %132 = vmatprep.subr.bf16.mxu0 0
    %133 = vmatpush1.bf16.msra.mxu0 0
    %134 = vmatprep.subr.bf16.mxu0 0
    %135 = vmatpush1.bf16.msra.mxu0 0
    %136 = vmatprep.subr.bf16.mxu0 0
    %137 = vmatpush1.bf16.msra.mxu0 0
    %138 = vmatprep.subr.bf16.mxu0 0
    %139 = vmatpush1.bf16.msra.mxu0 0
    %140 = vmatprep.subr.bf16.mxu0 0
    %141 = vmatpush1.bf16.msra.mxu0 0
    %142 = vmatprep.subr.bf16.mxu0 0
    %143 = vmatpush1.bf16.msra.mxu0 0
    %144 = vmatprep.subr.bf16.mxu0 0
    %145 = vmatpush1.bf16.msra.mxu0 0
    %146 = vmatprep.subr.bf16.mxu0 0
    %147 = vmatpush1.bf16.msra.mxu0 0
    %148 = vmatprep.subr.bf16.mxu0 0
    %149 = vmatpush1.bf16.msra.mxu0 0
    %150 = vmatprep.mubr.bf16.mxu0 0
    %151 = vmatmul.mubr.bf16.gmra.mrb[0].mxu0 %v116
    %v152 = vpop.f32.mrb[0].mxu0
    %v153 = vadd.f32 %v57, %v152
    %v154 = vpop.f32.mrb[0].mxu0
    %v155 = vadd.f32 %v61, %v154
    %v156 = vpop.f32.mrb[0].mxu0
    %v157 = vadd.f32 %v57, %v156
    %v158 = vpop.f32.mrb[0].mxu0
    %v159 = vadd.f32 %v61, %v158
    %160 = vdwg.mxu0
    %161 = vmatprep.subr.bf16.mxu0 %v101
    %162 = vmatpush1.bf16.msra.mxu0 %v100
    %163 = vmatprep.subr.bf16.mxu0 %v105
    %164 = vmatpush1.bf16.msra.mxu0 %v104
    %165 = vmatprep.subr.bf16.mxu0 0
    %166 = vmatpush1.bf16.msra.mxu0 0
    %167 = vmatprep.subr.bf16.mxu0 0
    %168 = vmatpush1.bf16.msra.mxu0 0
    %169 = vmatprep.subr.bf16.mxu0 0
    %170 = vmatpush1.bf16.msra.mxu0 0
    %171 = vmatprep.subr.bf16.mxu0 0
    %172 = vmatpush1.bf16.msra.mxu0 0
    %173 = vmatprep.subr.bf16.mxu0 0
    %174 = vmatpush1.bf16.msra.mxu0 0
    %175 = vmatprep.subr.bf16.mxu0 0
    %176 = vmatpush1.bf16.msra.mxu0 0
    %177 = vmatprep.subr.bf16.mxu0 0
    %178 = vmatpush1.bf16.msra.mxu0 0
    %179 = vmatprep.subr.bf16.mxu0 0
    %180 = vmatpush1.bf16.msra.mxu0 0
    %181 = vmatprep.subr.bf16.mxu0 0
    %182 = vmatpush1.bf16.msra.mxu0 0
    %183 = vmatprep.subr.bf16.mxu0 0
    %184 = vmatpush1.bf16.msra.mxu0 0
    %185 = vmatprep.subr.bf16.mxu0 0
    %186 = vmatpush1.bf16.msra.mxu0 0
    %187 = vmatprep.subr.bf16.mxu0 0
    %188 = vmatpush1.bf16.msra.mxu0 0
    %189 = vmatprep.subr.bf16.mxu0 0
    %190 = vmatpush1.bf16.msra.mxu0 0
    %191 = vmatprep.subr.bf16.mxu0 0
    %192 = vmatpush1.bf16.msra.mxu0 0
    %193 = vmatprep.mubr.bf16.mxu0 0
    %194 = vmatmul.mubr.bf16.gmra.mrb[0].mxu0 %v116
    %v195 = vpop.f32.mrb[0].mxu0
    %v196 = vadd.f32 %v65, %v195
    %v197 = vpop.f32.mrb[0].mxu0
    %v198 = vadd.f32 %v69, %v197
    %v199 = vpop.f32.mrb[0].mxu0
    %v200 = vadd.f32 %v65, %v199
    %v201 = vpop.f32.mrb[0].mxu0
    %v202 = vadd.f32 %v69, %v201
    %203 = vdwg.mxu0
    %v204 = vmax.f32 %v153, 0.0
    %v205 = vmax.f32 %v155, 0.0
    %v206 = vmax.f32 %v196, 0.0
    %v207 = vmax.f32 %v198, 0.0
    %v208 = vmax.f32 %v157, 0.0
    %v209 = vmax.f32 %v159, 0.0
    %v210 = vmax.f32 %v200, 0.0
    %v211 = vmax.f32 %v202, 0.0
    %v212 = vpack.c.bf16 %v208, %v204
    %v213 = vpack.c.bf16 %v209, %v205
    %v214 = vpack.c.bf16 %v210, %v206
    %v215 = vpack.c.bf16 %v211, %v207
    %v216 = vld [vmem:[%s3] sm:$0xff]
    %v217 = vld [vmem:[%s3 + $0x8] sm:$0xff]
    %v218 = vld [vmem:[%s3 + $0x10] sm:$0xff]
    %v219 = vld [vmem:[%s3 + $0x18] sm:$0xff]
    %v220 = vld [vmem:[%s3 + $0x20] sm:$0xff]
    %v221 = vld [vmem:[%s3 + $0x28] sm:$0xff]
    %v222 = vld [vmem:[%s3 + $0x30] sm:$0xff]
    %v223 = vld [vmem:[%s3 + $0x38] sm:$0xff]
    %v224 = vld [vmem:[%s3 + $0x40] sm:$0xff]
    %v225 = vld [vmem:[%s3 + $0x48] sm:$0xff]
    %v226 = vld [vmem:[%s3 + $0x50] sm:$0xff]
    %v227 = vld [vmem:[%s3 + $0x58] sm:$0xff]
    %v228 = vld [vmem:[%s3 + $0x60] sm:$0xff]
    %v229 = vld [vmem:[%s3 + $0x68] sm:$0xff]
    %v230 = vld [vmem:[%s3 + $0x70] sm:$0xff]
    %v231 = vld [vmem:[%s3 + $0x78] sm:$0xff]
    %v232 = vld [vmem:[%s3 + $0x80] sm:$0xff]
    %v233 = vld [vmem:[%s3 + $0x88] sm:$0xff]
    %v234 = vld [vmem:[%s3 + $0x90] sm:$0xff]
    %v235 = vld [vmem:[%s3 + $0x98] sm:$0xff]
    %v236 = vld [vmem:[%s3 + $0xa0] sm:$0xff]
    %v237 = vld [vmem:[%s3 + $0xa8] sm:$0xff]
    %v238 = vld [vmem:[%s3 + $0xb0] sm:$0xff]
    %v239 = vld [vmem:[%s3 + $0xb8] sm:$0xff]
    %v240 = vld [vmem:[%s3 + $0xc0] sm:$0xff]
    %v241 = vld [vmem:[%s3 + $0xc8] sm:$0xff]
    %v242 = vld [vmem:[%s3 + $0xd0] sm:$0xff]
    %v243 = vld [vmem:[%s3 + $0xd8] sm:$0xff]
    %v244 = vld [vmem:[%s3 + $0xe0] sm:$0xff]
    %v245 = vld [vmem:[%s3 + $0xe8] sm:$0xff]
    %v246 = vld [vmem:[%s3 + $0xf0] sm:$0xff]
    %v247 = vld [vmem:[%s3 + $0xf8] sm:$0xff]
    %v248 = vld [vmem:[%s3 + $0x100] sm:$0xff]
    %v249 = vld [vmem:[%s3 + $0x108] sm:$0xff]
    %v250 = vld [vmem:[%s3 + $0x110] sm:$0xff]
    %v251 = vld [vmem:[%s3 + $0x118] sm:$0xff]
    %v252 = vld [vmem:[%s3 + $0x120] sm:$0xff]
    %v253 = vld [vmem:[%s3 + $0x128] sm:$0xff]
    %v254 = vld [vmem:[%s3 + $0x130] sm:$0xff]
    %v255 = vld [vmem:[%s3 + $0x138] sm:$0xff]
    %v256 = vld [vmem:[%s3 + $0x140] sm:$0xff]
    %v257 = vld [vmem:[%s3 + $0x148] sm:$0xff]
    %v258 = vld [vmem:[%s3 + $0x150] sm:$0xff]
    %v259 = vld [vmem:[%s3 + $0x158] sm:$0xff]
    %v260 = vld [vmem:[%s3 + $0x160] sm:$0xff]
    %v261 = vld [vmem:[%s3 + $0x168] sm:$0xff]
    %v262 = vld [vmem:[%s3 + $0x170] sm:$0xff]
    %v263 = vld [vmem:[%s3 + $0x178] sm:$0xff]
    %v264 = vld [vmem:[%s3 + $0x180] sm:$0xff]
    %v265 = vld [vmem:[%s3 + $0x188] sm:$0xff]
    %v266 = vld [vmem:[%s3 + $0x190] sm:$0xff]
    %v267 = vld [vmem:[%s3 + $0x198] sm:$0xff]
    %v268 = vld [vmem:[%s3 + $0x1a0] sm:$0xff]
    %v269 = vld [vmem:[%s3 + $0x1a8] sm:$0xff]
    %v270 = vld [vmem:[%s3 + $0x1b0] sm:$0xff]
    %v271 = vld [vmem:[%s3 + $0x1b8] sm:$0xff]
    %v272 = vld [vmem:[%s3 + $0x1c0] sm:$0xff]
    %v273 = vld [vmem:[%s3 + $0x1c8] sm:$0xff]
    %v274 = vld [vmem:[%s3 + $0x1d0] sm:$0xff]
    %v275 = vld [vmem:[%s3 + $0x1d8] sm:$0xff]
    %v276 = vld [vmem:[%s3 + $0x1e0] sm:$0xff]
    %v277 = vld [vmem:[%s3 + $0x1e8] sm:$0xff]
    %v278 = vld [vmem:[%s3 + $0x1f0] sm:$0xff]
    %v279 = vld [vmem:[%s3 + $0x1f8] sm:$0xff]
    %v280 = vld [vmem:[%s4] sm:$0x3]
    %v282 = vlaneseq
    %v283 = vshrl.u32 %v282, 7
    %v284 = vsub.s32 0, %v283
    %v285 = vrot.slane %v280, %v284
    %v286 = vlaneseq
    %v287 = vshrl.u32 %v286, 7
    %v288 = vsub.s32 1, %v287
    %v289 = vrot.slane %v280, %v288
    %v356 = vunpack.c.l.b16 %v216
    %v357 = vunpack.c.h.b16 %v216
    %v358 = vunpack.c.l.b16 %v217
    %v359 = vunpack.c.h.b16 %v217
    %v360 = vunpack.c.l.b16 %v218
    %v361 = vunpack.c.h.b16 %v218
    %v362 = vunpack.c.l.b16 %v219
    %v363 = vunpack.c.h.b16 %v219
    %v364 = vunpack.c.l.b16 %v220
    %v365 = vunpack.c.h.b16 %v220
    %v366 = vunpack.c.l.b16 %v221
    %v367 = vunpack.c.h.b16 %v221
    %v368 = vunpack.c.l.b16 %v222
    %v369 = vunpack.c.h.b16 %v222
    %v370 = vunpack.c.l.b16 %v223
    %v371 = vunpack.c.h.b16 %v223
    %v372 = vunpack.c.l.b16 %v224
    %v373 = vunpack.c.h.b16 %v224
    %v374 = vunpack.c.l.b16 %v225
    %v375 = vunpack.c.h.b16 %v225
    %v376 = vunpack.c.l.b16 %v226
    %v377 = vunpack.c.h.b16 %v226
    %v378 = vunpack.c.l.b16 %v227
    %v379 = vunpack.c.h.b16 %v227
    %v380 = vunpack.c.l.b16 %v228
    %v381 = vunpack.c.h.b16 %v228
    %v382 = vunpack.c.l.b16 %v229
    %v383 = vunpack.c.h.b16 %v229
    %v384 = vunpack.c.l.b16 %v230
    %v385 = vunpack.c.h.b16 %v230
    %v386 = vunpack.c.l.b16 %v231
    %v387 = vunpack.c.h.b16 %v231
    %v388 = vunpack.c.l.b16 %v232
    %v389 = vunpack.c.h.b16 %v232
    %v390 = vunpack.c.l.b16 %v233
    %v391 = vunpack.c.h.b16 %v233
    %v392 = vunpack.c.l.b16 %v234
    %v393 = vunpack.c.h.b16 %v234
    %v394 = vunpack.c.l.b16 %v235
    %v395 = vunpack.c.h.b16 %v235
    %v396 = vunpack.c.l.b16 %v236
    %v397 = vunpack.c.h.b16 %v236
    %v398 = vunpack.c.l.b16 %v237
    %v399 = vunpack.c.h.b16 %v237
    %v400 = vunpack.c.l.b16 %v238
    %v401 = vunpack.c.h.b16 %v238
    %v402 = vunpack.c.l.b16 %v239
    %v403 = vunpack.c.h.b16 %v239
    %v404 = vunpack.c.l.b16 %v240
    %v405 = vunpack.c.h.b16 %v240
    %v406 = vunpack.c.l.b16 %v241
    %v407 = vunpack.c.h.b16 %v241
    %v408 = vunpack.c.l.b16 %v242
    %v409 = vunpack.c.h.b16 %v242
    %v410 = vunpack.c.l.b16 %v243
    %v411 = vunpack.c.h.b16 %v243
    %v412 = vunpack.c.l.b16 %v244
    %v413 = vunpack.c.h.b16 %v244
    %v414 = vunpack.c.l.b16 %v245
    %v415 = vunpack.c.h.b16 %v245
    %v416 = vunpack.c.l.b16 %v246
    %v417 = vunpack.c.h.b16 %v246
    %v418 = vunpack.c.l.b16 %v247
    %v419 = vunpack.c.h.b16 %v247
    %v420 = vunpack.c.l.b16 %v248
    %v421 = vunpack.c.h.b16 %v248
    %v422 = vunpack.c.l.b16 %v249
    %v423 = vunpack.c.h.b16 %v249
    %v424 = vunpack.c.l.b16 %v250
    %v425 = vunpack.c.h.b16 %v250
    %v426 = vunpack.c.l.b16 %v251
    %v427 = vunpack.c.h.b16 %v251
    %v428 = vunpack.c.l.b16 %v252
    %v429 = vunpack.c.h.b16 %v252
    %v430 = vunpack.c.l.b16 %v253
    %v431 = vunpack.c.h.b16 %v253
    %v432 = vunpack.c.l.b16 %v254
    %v433 = vunpack.c.h.b16 %v254
    %v434 = vunpack.c.l.b16 %v255
    %v435 = vunpack.c.h.b16 %v255
    %v436 = vunpack.c.l.b16 %v256
    %v437 = vunpack.c.h.b16 %v256
    %v438 = vunpack.c.l.b16 %v257
    %v439 = vunpack.c.h.b16 %v257
    %v440 = vunpack.c.l.b16 %v258
    %v441 = vunpack.c.h.b16 %v258
    %v442 = vunpack.c.l.b16 %v259
    %v443 = vunpack.c.h.b16 %v259
    %v444 = vunpack.c.l.b16 %v260
    %v445 = vunpack.c.h.b16 %v260
    %v446 = vunpack.c.l.b16 %v261
    %v447 = vunpack.c.h.b16 %v261
    %v448 = vunpack.c.l.b16 %v262
    %v449 = vunpack.c.h.b16 %v262
    %v450 = vunpack.c.l.b16 %v263
    %v451 = vunpack.c.h.b16 %v263
    %v452 = vunpack.c.l.b16 %v264
    %v453 = vunpack.c.h.b16 %v264
    %v454 = vunpack.c.l.b16 %v265
    %v455 = vunpack.c.h.b16 %v265
    %v456 = vunpack.c.l.b16 %v266
    %v457 = vunpack.c.h.b16 %v266
    %v458 = vunpack.c.l.b16 %v267
    %v459 = vunpack.c.h.b16 %v267
    %v460 = vunpack.c.l.b16 %v268
    %v461 = vunpack.c.h.b16 %v268
    %v462 = vunpack.c.l.b16 %v269
    %v463 = vunpack.c.h.b16 %v269
    %v464 = vunpack.c.l.b16 %v270
    %v465 = vunpack.c.h.b16 %v270
    %v466 = vunpack.c.l.b16 %v271
    %v467 = vunpack.c.h.b16 %v271
    %v468 = vunpack.c.l.b16 %v272
    %v469 = vunpack.c.h.b16 %v272
    %v470 = vunpack.c.l.b16 %v273
    %v471 = vunpack.c.h.b16 %v273
    %v472 = vunpack.c.l.b16 %v274
    %v473 = vunpack.c.h.b16 %v274
    %v474 = vunpack.c.l.b16 %v275
    %v475 = vunpack.c.h.b16 %v275
    %v476 = vunpack.c.l.b16 %v276
    %v477 = vunpack.c.h.b16 %v276
    %v478 = vunpack.c.l.b16 %v277
    %v479 = vunpack.c.h.b16 %v277
    %v480 = vunpack.c.l.b16 %v278
    %v481 = vunpack.c.h.b16 %v278
    %v482 = vunpack.c.l.b16 %v279
    %v483 = vunpack.c.h.b16 %v279
    %v484 = vpack.c.b16 %v358, %v356
    %v485 = vpack.c.b16 %v359, %v357
    %v486 = vpack.c.b16 %v362, %v360
    %v487 = vpack.c.b16 %v363, %v361
    %v488 = vpack.c.b16 %v366, %v364
    %v489 = vpack.c.b16 %v367, %v365
    %v490 = vpack.c.b16 %v370, %v368
    %v491 = vpack.c.b16 %v371, %v369
    %v492 = vpack.c.b16 %v374, %v372
    %v493 = vpack.c.b16 %v375, %v373
    %v494 = vpack.c.b16 %v378, %v376
    %v495 = vpack.c.b16 %v379, %v377
    %v496 = vpack.c.b16 %v382, %v380
    %v497 = vpack.c.b16 %v383, %v381
    %v498 = vpack.c.b16 %v386, %v384
    %v499 = vpack.c.b16 %v387, %v385
    %v500 = vpack.c.b16 %v390, %v388
    %v501 = vpack.c.b16 %v391, %v389
    %v502 = vpack.c.b16 %v394, %v392
    %v503 = vpack.c.b16 %v395, %v393
    %v504 = vpack.c.b16 %v398, %v396
    %v505 = vpack.c.b16 %v399, %v397
    %v506 = vpack.c.b16 %v402, %v400
    %v507 = vpack.c.b16 %v403, %v401
    %v508 = vpack.c.b16 %v406, %v404
    %v509 = vpack.c.b16 %v407, %v405
    %v510 = vpack.c.b16 %v410, %v408
    %v511 = vpack.c.b16 %v411, %v409
    %v512 = vpack.c.b16 %v414, %v412
    %v513 = vpack.c.b16 %v415, %v413
    %v514 = vpack.c.b16 %v418, %v416
    %v515 = vpack.c.b16 %v419, %v417
    %v516 = vpack.c.b16 %v422, %v420
    %v517 = vpack.c.b16 %v423, %v421
    %v518 = vpack.c.b16 %v426, %v424
    %v519 = vpack.c.b16 %v427, %v425
    %v520 = vpack.c.b16 %v430, %v428
    %v521 = vpack.c.b16 %v431, %v429
    %v522 = vpack.c.b16 %v434, %v432
    %v523 = vpack.c.b16 %v435, %v433
    %v524 = vpack.c.b16 %v438, %v436
    %v525 = vpack.c.b16 %v439, %v437
    %v526 = vpack.c.b16 %v442, %v440
    %v527 = vpack.c.b16 %v443, %v441
    %v528 = vpack.c.b16 %v446, %v444
    %v529 = vpack.c.b16 %v447, %v445
    %v530 = vpack.c.b16 %v450, %v448
    %v531 = vpack.c.b16 %v451, %v449
    %v532 = vpack.c.b16 %v454, %v452
    %v533 = vpack.c.b16 %v455, %v453
    %v534 = vpack.c.b16 %v458, %v456
    %v535 = vpack.c.b16 %v459, %v457
    %v536 = vpack.c.b16 %v462, %v460
    %v537 = vpack.c.b16 %v463, %v461
    %v538 = vpack.c.b16 %v466, %v464
    %v539 = vpack.c.b16 %v467, %v465
    %v540 = vpack.c.b16 %v470, %v468
    %v541 = vpack.c.b16 %v471, %v469
    %v542 = vpack.c.b16 %v474, %v472
    %v543 = vpack.c.b16 %v475, %v473
    %v544 = vpack.c.b16 %v478, %v476
    %v545 = vpack.c.b16 %v479, %v477
    %v546 = vpack.c.b16 %v482, %v480
    %v547 = vpack.c.b16 %v483, %v481
    %612 = vmatprep.subr.bf16.mxu0 %v485
    %613 = vmatpush1.bf16.msra.mxu0 %v484
    %614 = vmatprep.subr.bf16.mxu0 %v487
    %615 = vmatpush1.bf16.msra.mxu0 %v486
    %616 = vmatprep.subr.bf16.mxu0 %v489
    %617 = vmatpush1.bf16.msra.mxu0 %v488
    %618 = vmatprep.subr.bf16.mxu0 %v491
    %619 = vmatpush1.bf16.msra.mxu0 %v490
    %620 = vmatprep.subr.bf16.mxu0 %v493
    %621 = vmatpush1.bf16.msra.mxu0 %v492
    %622 = vmatprep.subr.bf16.mxu0 %v495
    %623 = vmatpush1.bf16.msra.mxu0 %v494
    %624 = vmatprep.subr.bf16.mxu0 %v497
    %625 = vmatpush1.bf16.msra.mxu0 %v496
    %626 = vmatprep.subr.bf16.mxu0 %v499
    %627 = vmatpush1.bf16.msra.mxu0 %v498
    %628 = vmatprep.subr.bf16.mxu0 %v501
    %629 = vmatpush1.bf16.msra.mxu0 %v500
    %630 = vmatprep.subr.bf16.mxu0 %v503
    %631 = vmatpush1.bf16.msra.mxu0 %v502
    %632 = vmatprep.subr.bf16.mxu0 %v505
    %633 = vmatpush1.bf16.msra.mxu0 %v504
    %634 = vmatprep.subr.bf16.mxu0 %v507
    %635 = vmatpush1.bf16.msra.mxu0 %v506
    %636 = vmatprep.subr.bf16.mxu0 %v509
    %637 = vmatpush1.bf16.msra.mxu0 %v508
    %638 = vmatprep.subr.bf16.mxu0 %v511
    %639 = vmatpush1.bf16.msra.mxu0 %v510
    %640 = vmatprep.subr.bf16.mxu0 %v513
    %641 = vmatpush1.bf16.msra.mxu0 %v512
    %642 = vmatprep.subr.bf16.mxu0 %v515
    %643 = vmatpush1.bf16.msra.mxu0 %v514
    %644 = vmatprep.mubr.bf16.mxu0 %v213
    %645 = vmatmul.mubr.bf16.gmra.mrb[0].mxu0 %v212
    %v646 = vpop.f32.mrb[0].mxu0
    %v647 = vadd.f32 %v285, %v646
    %v648 = vpop.f32.mrb[0].mxu0
    %v649 = vadd.f32 %v289, %v648
    %v650 = vpop.f32.mrb[0].mxu0
    %v651 = vadd.f32 %v285, %v650
    %v652 = vpop.f32.mrb[0].mxu0
    %v653 = vadd.f32 %v289, %v652
    %654 = vdwg.mxu0
    %655 = vmatprep.subr.bf16.mxu0 %v517
    %656 = vmatpush1.bf16.msra.mxu0 %v516
    %657 = vmatprep.subr.bf16.mxu0 %v519
    %658 = vmatpush1.bf16.msra.mxu0 %v518
    %659 = vmatprep.subr.bf16.mxu0 %v521
    %660 = vmatpush1.bf16.msra.mxu0 %v520
    %661 = vmatprep.subr.bf16.mxu0 %v523
    %662 = vmatpush1.bf16.msra.mxu0 %v522
    %663 = vmatprep.subr.bf16.mxu0 %v525
    %664 = vmatpush1.bf16.msra.mxu0 %v524
    %665 = vmatprep.subr.bf16.mxu0 %v527
    %666 = vmatpush1.bf16.msra.mxu0 %v526
    %667 = vmatprep.subr.bf16.mxu0 %v529
    %668 = vmatpush1.bf16.msra.mxu0 %v528
    %669 = vmatprep.subr.bf16.mxu0 %v531
    %670 = vmatpush1.bf16.msra.mxu0 %v530
    %671 = vmatprep.subr.bf16.mxu0 %v533
    %672 = vmatpush1.bf16.msra.mxu0 %v532
    %673 = vmatprep.subr.bf16.mxu0 %v535
    %674 = vmatpush1.bf16.msra.mxu0 %v534
    %675 = vmatprep.subr.bf16.mxu0 %v537
    %676 = vmatpush1.bf16.msra.mxu0 %v536
    %677 = vmatprep.subr.bf16.mxu0 %v539
    %678 = vmatpush1.bf16.msra.mxu0 %v538
    %679 = vmatprep.subr.bf16.mxu0 %v541
    %680 = vmatpush1.bf16.msra.mxu0 %v540
    %681 = vmatprep.subr.bf16.mxu0 %v543
    %682 = vmatpush1.bf16.msra.mxu0 %v542
    %683 = vmatprep.subr.bf16.mxu0 %v545
    %684 = vmatpush1.bf16.msra.mxu0 %v544
    %685 = vmatprep.subr.bf16.mxu0 %v547
    %686 = vmatpush1.bf16.msra.mxu0 %v546
    %687 = vmatprep.mubr.bf16.mxu0 %v215
    %688 = vmatmul.mubr.bf16.gmra.mrb[0].mxu0 %v214
    %v689 = vpop.f32.mrb[0].mxu0
    %v690 = vadd.f32 %v647, %v689
    %v691 = vpop.f32.mrb[0].mxu0
    %v692 = vadd.f32 %v649, %v691
    %v693 = vpop.f32.mrb[0].mxu0
    %v694 = vadd.f32 %v651, %v693
    %v695 = vpop.f32.mrb[0].mxu0
    %v696 = vadd.f32 %v653, %v695
    %697 = vdwg.mxu0
    %v698 = vmax.f32 %v690, 0.0
    %v699 = vmax.f32 %v692, 0.0
    %v700 = vmax.f32 %v694, 0.0
    %v701 = vmax.f32 %v696, 0.0
    %v702 = vpack.c.bf16 %v700, %v698
    %v703 = vpack.c.bf16 %v701, %v699
    %v704 = vld [vmem:[%s5] sm:$0xf]
    %v705 = vld [vmem:[%s5 + $0x4] sm:$0xf]
    %v706 = vld [vmem:[%s5 + $0x8] sm:$0xf]
    %v707 = vld [vmem:[%s5 + $0xc] sm:$0xf]
    %v708 = vld [vmem:[%s5 + $0x10] sm:$0xf]
    %v709 = vld [vmem:[%s5 + $0x14] sm:$0xf]
    %v710 = vld [vmem:[%s5 + $0x18] sm:$0xf]
    %v711 = vld [vmem:[%s5 + $0x1c] sm:$0xf]
    %v712 = vld [vmem:[%s5 + $0x20] sm:$0xf]
    %v713 = vld [vmem:[%s5 + $0x24] sm:$0xf]
    %v714 = vld [vmem:[%s5 + $0x28] sm:$0xf]
    %v715 = vld [vmem:[%s5 + $0x2c] sm:$0xf]
    %v716 = vld [vmem:[%s5 + $0x30] sm:$0xf]
    %v717 = vld [vmem:[%s5 + $0x34] sm:$0xf]
    %v718 = vld [vmem:[%s5 + $0x38] sm:$0xf]
    %v719 = vld [vmem:[%s5 + $0x3c] sm:$0xf]
    %v720 = vld [vmem:[%s5 + $0x40] sm:$0xf]
    %v721 = vld [vmem:[%s5 + $0x44] sm:$0xf]
    %v722 = vld [vmem:[%s5 + $0x48] sm:$0xf]
    %v723 = vld [vmem:[%s5 + $0x4c] sm:$0xf]
    %v724 = vld [vmem:[%s5 + $0x50] sm:$0xf]
    %v725 = vld [vmem:[%s5 + $0x54] sm:$0xf]
    %v726 = vld [vmem:[%s5 + $0x58] sm:$0xf]
    %v727 = vld [vmem:[%s5 + $0x5c] sm:$0xf]
    %v728 = vld [vmem:[%s5 + $0x60] sm:$0xf]
    %v729 = vld [vmem:[%s5 + $0x64] sm:$0xf]
    %v730 = vld [vmem:[%s5 + $0x68] sm:$0xf]
    %v731 = vld [vmem:[%s5 + $0x6c] sm:$0xf]
    %v732 = vld [vmem:[%s5 + $0x70] sm:$0xf]
    %v733 = vld [vmem:[%s5 + $0x74] sm:$0xf]
    %v734 = vld [vmem:[%s5 + $0x78] sm:$0xf]
    %v735 = vld [vmem:[%s5 + $0x7c] sm:$0xf]
    %v736 = vld [vmem:[%s6] sm:$0x1]
    %v738 = vlaneseq
    %v739 = vshrl.u32 %v738, 7
    %v740 = vsub.s32 0, %v739
    %v741 = vrot.slane %v736, %v740
    %v775 = vunpack.c.l.b16 %v704
    %v776 = vunpack.c.l.b16 %v705
    %v777 = vunpack.c.l.b16 %v706
    %v778 = vunpack.c.l.b16 %v707
    %v779 = vunpack.c.l.b16 %v708
    %v780 = vunpack.c.l.b16 %v709
    %v781 = vunpack.c.l.b16 %v710
    %v782 = vunpack.c.l.b16 %v711
    %v783 = vunpack.c.l.b16 %v712
    %v784 = vunpack.c.l.b16 %v713
    %v785 = vunpack.c.l.b16 %v714
    %v786 = vunpack.c.l.b16 %v715
    %v787 = vunpack.c.l.b16 %v716
    %v788 = vunpack.c.l.b16 %v717
    %v789 = vunpack.c.l.b16 %v718
    %v790 = vunpack.c.l.b16 %v719
    %v791 = vunpack.c.l.b16 %v720
    %v792 = vunpack.c.l.b16 %v721
    %v793 = vunpack.c.l.b16 %v722
    %v794 = vunpack.c.l.b16 %v723
    %v795 = vunpack.c.l.b16 %v724
    %v796 = vunpack.c.l.b16 %v725
    %v797 = vunpack.c.l.b16 %v726
    %v798 = vunpack.c.l.b16 %v727
    %v799 = vunpack.c.l.b16 %v728
    %v800 = vunpack.c.l.b16 %v729
    %v801 = vunpack.c.l.b16 %v730
    %v802 = vunpack.c.l.b16 %v731
    %v803 = vunpack.c.l.b16 %v732
    %v804 = vunpack.c.l.b16 %v733
    %v805 = vunpack.c.l.b16 %v734
    %v806 = vunpack.c.l.b16 %v735
    %v807 = vpack.c.b16 %v776, %v775
    %v808 = vpack.c.b16 %v778, %v777
    %v809 = vpack.c.b16 %v780, %v779
    %v810 = vpack.c.b16 %v782, %v781
    %v811 = vpack.c.b16 %v784, %v783
    %v812 = vpack.c.b16 %v786, %v785
    %v813 = vpack.c.b16 %v788, %v787
    %v814 = vpack.c.b16 %v790, %v789
    %v815 = vpack.c.b16 %v792, %v791
    %v816 = vpack.c.b16 %v794, %v793
    %v817 = vpack.c.b16 %v796, %v795
    %v818 = vpack.c.b16 %v798, %v797
    %v819 = vpack.c.b16 %v800, %v799
    %v820 = vpack.c.b16 %v802, %v801
    %v821 = vpack.c.b16 %v804, %v803
    %v822 = vpack.c.b16 %v806, %v805
    %839 = vmatprep.subr.bf16.mxu0 0
    %840 = vmatpush1.bf16.msra.mxu0 %v807
    %841 = vmatprep.subr.bf16.mxu0 0
    %842 = vmatpush1.bf16.msra.mxu0 %v808
    %843 = vmatprep.subr.bf16.mxu0 0
    %844 = vmatpush1.bf16.msra.mxu0 %v809
    %845 = vmatprep.subr.bf16.mxu0 0
    %846 = vmatpush1.bf16.msra.mxu0 %v810
    %847 = vmatprep.subr.bf16.mxu0 0
    %848 = vmatpush1.bf16.msra.mxu0 %v811
    %849 = vmatprep.subr.bf16.mxu0 0
    %850 = vmatpush1.bf16.msra.mxu0 %v812
    %851 = vmatprep.subr.bf16.mxu0 0
    %852 = vmatpush1.bf16.msra.mxu0 %v813
    %853 = vmatprep.subr.bf16.mxu0 0
    %854 = vmatpush1.bf16.msra.mxu0 %v814
    %855 = vmatprep.subr.bf16.mxu0 0
    %856 = vmatpush1.bf16.msra.mxu0 %v815
    %857 = vmatprep.subr.bf16.mxu0 0
    %858 = vmatpush1.bf16.msra.mxu0 %v816
    %859 = vmatprep.subr.bf16.mxu0 0
    %860 = vmatpush1.bf16.msra.mxu0 %v817
    %861 = vmatprep.subr.bf16.mxu0 0
    %862 = vmatpush1.bf16.msra.mxu0 %v818
    %863 = vmatprep.subr.bf16.mxu0 0
    %864 = vmatpush1.bf16.msra.mxu0 %v819
    %865 = vmatprep.subr.bf16.mxu0 0
    %866 = vmatpush1.bf16.msra.mxu0 %v820
    %867 = vmatprep.subr.bf16.mxu0 0
    %868 = vmatpush1.bf16.msra.mxu0 %v821
    %869 = vmatprep.subr.bf16.mxu0 0
    %870 = vmatpush1.bf16.msra.mxu0 %v822
    %871 = vmatprep.mubr.bf16.mxu0 %v703
    %872 = vmatmul.mubr.bf16.gmra.mrb[0].mxu0 %v702
    %v873 = vpop.f32.mrb[0].mxu0
    %v874 = vadd.f32 %v741, %v873
    %v875 = vpop.f32.mrb[0].mxu0
    %v876 = vpop.f32.mrb[0].mxu0
    %v877 = vadd.f32 %v741, %v876
    %v878 = vpop.f32.mrb[0].mxu0
    %879 = vdwg.mxu0
    %v880 = vmax.f32 %v874, 0.0
    %v881 = vmax.f32 %v877, 0.0
    %v882 = vpack.c.bf16 %v881, %v880
    %v883 = vld [vmem:[%s7] sm:$0xf]
    %v884 = vld [vmem:[%s7 + $0x4] sm:$0xf]
    %v885 = vld [vmem:[%s7 + $0x8] sm:$0xf]
    %v886 = vld [vmem:[%s7 + $0xc] sm:$0xf]
    %v887 = vld [vmem:[%s7 + $0x10] sm:$0xf]
    %v888 = vld [vmem:[%s7 + $0x14] sm:$0xf]
    %v889 = vld [vmem:[%s7 + $0x18] sm:$0xf]
    %v890 = vld [vmem:[%s7 + $0x1c] sm:$0xf]
    %v891 = vld [vmem:[%s7 + $0x20] sm:$0xf]
    %v892 = vld [vmem:[%s7 + $0x24] sm:$0xf]
    %v893 = vld [vmem:[%s7 + $0x28] sm:$0xf]
    %v894 = vld [vmem:[%s7 + $0x2c] sm:$0xf]
    %v895 = vld [vmem:[%s7 + $0x30] sm:$0xf]
    %v896 = vld [vmem:[%s7 + $0x34] sm:$0xf]
    %v897 = vld [vmem:[%s7 + $0x38] sm:$0xf]
    %v898 = vld [vmem:[%s7 + $0x3c] sm:$0xf]
    %v899 = vld [vmem:[%s8] sm:$0x1]
    %v901 = vlaneseq
    %v902 = vshrl.u32 %v901, 7
    %v903 = vsub.s32 0, %v902
    %v904 = vrot.slane %v899, %v903
    %v922 = vunpack.c.l.b16 %v883
    %v923 = vunpack.c.l.b16 %v884
    %v924 = vunpack.c.l.b16 %v885
    %v925 = vunpack.c.l.b16 %v886
    %v926 = vunpack.c.l.b16 %v887
    %v927 = vunpack.c.l.b16 %v888
    %v928 = vunpack.c.l.b16 %v889
    %v929 = vunpack.c.l.b16 %v890
    %v930 = vunpack.c.l.b16 %v891
    %v931 = vunpack.c.l.b16 %v892
    %v932 = vunpack.c.l.b16 %v893
    %v933 = vunpack.c.l.b16 %v894
    %v934 = vunpack.c.l.b16 %v895
    %v935 = vunpack.c.l.b16 %v896
    %v936 = vunpack.c.l.b16 %v897
    %v937 = vunpack.c.l.b16 %v898
    %v938 = vpack.c.b16 %v923, %v922
    %v939 = vpack.c.b16 %v925, %v924
    %v940 = vpack.c.b16 %v927, %v926
    %v941 = vpack.c.b16 %v929, %v928
    %v942 = vpack.c.b16 %v931, %v930
    %v943 = vpack.c.b16 %v933, %v932
    %v944 = vpack.c.b16 %v935, %v934
    %v945 = vpack.c.b16 %v937, %v936
    %954 = vmatprep.subr.bf16.mxu0 0
    %955 = vmatpush1.bf16.msra.mxu0 %v938
    %956 = vmatprep.subr.bf16.mxu0 0
    %957 = vmatpush1.bf16.msra.mxu0 %v939
    %958 = vmatprep.subr.bf16.mxu0 0
    %959 = vmatpush1.bf16.msra.mxu0 %v940
    %960 = vmatprep.subr.bf16.mxu0 0
    %961 = vmatpush1.bf16.msra.mxu0 %v941
    %962 = vmatprep.subr.bf16.mxu0 0
    %963 = vmatpush1.bf16.msra.mxu0 %v942
    %964 = vmatprep.subr.bf16.mxu0 0
    %965 = vmatpush1.bf16.msra.mxu0 %v943
    %966 = vmatprep.subr.bf16.mxu0 0
    %967 = vmatpush1.bf16.msra.mxu0 %v944
    %968 = vmatprep.subr.bf16.mxu0 0
    %969 = vmatpush1.bf16.msra.mxu0 %v945
    %970 = vmatprep.subr.bf16.mxu0 0
    %971 = vmatpush1.bf16.msra.mxu0 0
    %972 = vmatprep.subr.bf16.mxu0 0
    %973 = vmatpush1.bf16.msra.mxu0 0
    %974 = vmatprep.subr.bf16.mxu0 0
    %975 = vmatpush1.bf16.msra.mxu0 0
    %976 = vmatprep.subr.bf16.mxu0 0
    %977 = vmatpush1.bf16.msra.mxu0 0
    %978 = vmatprep.subr.bf16.mxu0 0
    %979 = vmatpush1.bf16.msra.mxu0 0
    %980 = vmatprep.subr.bf16.mxu0 0
    %981 = vmatpush1.bf16.msra.mxu0 0
    %982 = vmatprep.subr.bf16.mxu0 0
    %983 = vmatpush1.bf16.msra.mxu0 0
    %984 = vmatprep.subr.bf16.mxu0 0
    %985 = vmatpush1.bf16.msra.mxu0 0
    %986 = vmatprep.mubr.bf16.mxu0 0
    %987 = vmatmul.mubr.bf16.gmra.mrb[0].mxu0 %v882
    %v988 = vpop.f32.mrb[0].mxu0
    %v989 = vadd.f32 %v904, %v988
    %v990 = vpop.f32.mrb[0].mxu0
    %v991 = vpop.f32.mrb[0].mxu0
    %v992 = vadd.f32 %v904, %v991
    %v993 = vpop.f32.mrb[0].mxu0
    %994 = vdwg.mxu0
    %v995 = vmax.f32 %v989, 0.0
    %v996 = vmax.f32 %v992, 0.0
    %v997 = vpack.c.bf16 %v996, %v995
    %v998 = vunpack.c.l.bf16 %v997
    %v999 = vunpack.c.h.bf16 %v997
    %v1000 = vld [vmem:[%s9] sm:$0x1]
    %v1002 = vlaneseq
    %v1003 = vshrl.u32 %v1002, 7
    %v1004 = vsub.s32 0, %v1003
    %v1005 = vrot.slane %v1000, %v1004
    %v1007 = vmul.f32 %v998, %v1005
    %v1008 = vmul.f32 %v999, %v1005
    %vm1009 = vcmask 523264
    %v1010 = vsel %vm1009, %v1007, 0.0
    %1011 = vadd.xlane.f32.xlu0 %v1010
    %v1012 = vpop.xlane.xlu0 %1011
    %v1013 = vsel %vm1009, %v1008, 0.0
    %1014 = vadd.xlane.f32.xlu0 %v1013
    %v1015 = vpop.xlane.xlu0 %1014
    %v1016 = vld [vmem:[#allocation2] sm:$0x1]
    %v1018 = vlaneseq
    %v1019 = vshrl.u32 %v1018, 7
    %v1020 = vsub.s32 0, %v1019
    %v1021 = vrot.slane %v1016, %v1020
    %v1023 = vadd.f32 %v1012, %v1021
    %v1024 = vadd.f32 %v1015, %v1021
    %vm1025 = vcmask 7168
    %1026 = vst.msk [vmem:[#allocation3] sm:$0xff] %vm1025, %v1023
    %1027 = vst.msk [vmem:[#allocation3 + $0x8] sm:$0xff] %vm1025, %v1024
    // Predicated region
    $region46: #{ic50_forward.1} parent=1 // pred_check
      _
    $region47: #{ic50_forward.1} parent=1 // pred_check_branch
      %1029 = sbr.rel (0) target = $region49
    $region48: #{ic50_forward.1} parent=1 // pred_region
      // Predicated region
      $region50: #{ic50_forward.1} parent=48 // pred_check
        _
      $region51: #{ic50_forward.1} parent=48 // pred_check_branch
        %1031 = sbr.rel (0) target = $region53
      $region52: #{ic50_forward.1} parent=48 // pred_region
        // Predicated region
        $region54: #{ic50_forward.1} parent=52 // pred_check
          _
        $region55: #{ic50_forward.1} parent=52 // pred_check_branch
          %1033 = sbr.rel (0) target = $region57
        $region56: #{ic50_forward.1} parent=52 // pred_region
          // Predicated region
          $region69: #{ic50_forward.1} parent=56 // pred_check
            _
          $region70: #{ic50_forward.1} parent=56 // pred_check_branch
            %1048 = sbr.rel (0) target = $region72
          $region71: #{ic50_forward.1} parent=56 // pred_region
            loop: start=0, step=1, limit=1
            $region73: #{ic50_forward.1} parent=71 // loop_pre_header
              _
            $region74: #{ic50_forward.1} parent=71 // loop_header
              %s1050 = sphi 0, %s1054
              %p1051 = scmp.ge.s32.totalorder %s1050, 1
              %s1055 = sphi [#allocation3], [#allocation3]
              %s1056 = sphi %s11, %s11
            $region75: #{ic50_forward.1} parent=71 // loop_header_branch
              %1053 = sbr.rel (%p1051) target = $region79
            $region76: #{ic50_forward.1} parent=71 // loop_body
              %v1057 = vld [vmem:[%s1055] sm:$0xff]
              %1058 = vst [vmem:[%s1056] sm:$0xff] %v1057
            $region77: #{ic50_forward.1} parent=71 // loop_footer
              %s1054 = sadd.s32 1, %s1050
            $region78: #{ic50_forward.1} parent=71 // loop_footer_branch
              %1049 = sbr.rel target = $region74
            $region79: #{ic50_forward.1} parent=71 // loop_exit
              _
          $region72: #{ic50_forward.1} parent=56 // pred_fallthru
            _
          // Predicated region
          $region80: #{ic50_forward.1} parent=56 // pred_check
            _
          $region81: #{ic50_forward.1} parent=56 // pred_check_branch
            %1060 = sbr.rel target = $region83
          $region82: #{ic50_forward.1} parent=56 // pred_region
            _
          $region83: #{ic50_forward.1} parent=56 // pred_fallthru
            _
        $region57: #{ic50_forward.1} parent=52 // pred_fallthru
          _
        // Predicated region
        $region58: #{ic50_forward.1} parent=52 // pred_check
          _
        $region59: #{ic50_forward.1} parent=52 // pred_check_branch
          %1035 = sbr.rel target = $region61
        $region60: #{ic50_forward.1} parent=52 // pred_region
          loop: start=0, step=1, limit=1
          $region62: #{ic50_forward.1} parent=60 // loop_pre_header
            _
          $region63: #{ic50_forward.1} parent=60 // loop_header
            %s1038 = sphi 0, %s1042
            %p1039 = scmp.ge.s32.totalorder %s1038, 1
            %s1043 = sphi [#allocation3], [#allocation3]
            %s1044 = sphi %s11, %s11
          $region64: #{ic50_forward.1} parent=60 // loop_header_branch
            %1041 = sbr.rel (%p1039) target = $region68
          $region65: #{ic50_forward.1} parent=60 // loop_body
            %v1045 = vld [vmem:[%s1043] sm:$0xff]
            %1046 = vst [vmem:[%s1044] sm:$0xff] %v1045
          $region66: #{ic50_forward.1} parent=60 // loop_footer
            %s1042 = sadd.s32 1, %s1038
          $region67: #{ic50_forward.1} parent=60 // loop_footer_branch
            %1037 = sbr.rel target = $region63
          $region68: #{ic50_forward.1} parent=60 // loop_exit
            _
        $region61: #{ic50_forward.1} parent=52 // pred_fallthru
          _
      $region53: #{ic50_forward.1} parent=48 // pred_fallthru
        _
      %1061 = vnop
    $region49: #{ic50_forward.1} parent=1 // pred_fallthru
      _
    // Predicated region
    $region84: #{ic50_forward.1} parent=1 // pred_check
      _
    $region85: #{ic50_forward.1} parent=1 // pred_check_branch
      %1063 = sbr.rel (0) target = $region87
    $region86: #{ic50_forward.1} parent=1 // pred_region
      _
    $region87: #{ic50_forward.1} parent=1 // pred_fallthru
      _

</llo_original>
